<compile_context>
chip_gen: v7x
topology: tpu7x:2x2x1
jax: 0.10.0
libtpu: 0.0.40
codegen_flags: <defaults>
</compile_context>

<pallas_src>
import jax
import jax.numpy as jnp
from jax.experimental import pallas as pl
from jax.experimental.pallas import tpu as pltpu


def _round_up(x, m):
    return ((x + m - 1) // m) * m


def decoder_kernel(z_ref, w1_ref, b1_ref, w2_ref, b2_ref, w3_ref, b3_ref, o_ref):
    # Layer 1: linear (bf16 MXU, fp32 acc) + ReLU (fp32 epilogue)
    z = z_ref[...].astype(jnp.bfloat16)
    h1 = jnp.dot(z, w1_ref[...], preferred_element_type=jnp.float32)
    h1 = jnp.maximum(h1 + b1_ref[...], 0.0)
    # Layer 2
    h2 = jnp.dot(h1.astype(jnp.bfloat16), w2_ref[...],
                 preferred_element_type=jnp.float32)
    h2 = jnp.maximum(h2 + b2_ref[...], 0.0)
    # Layer 3 + sigmoid (exp + approx reciprocal -> EUP slot)
    h3 = jnp.dot(h2.astype(jnp.bfloat16), w3_ref[...],
                 preferred_element_type=jnp.float32)
    h3 = h3 + b3_ref[...]
    o_ref[...] = pl.reciprocal(1.0 + jnp.exp(-h3), approx=True).astype(o_ref.dtype)


def _choose_batch_tile(B):
    """Pick an MXU-friendly batch tile.

    - B <= 128: single tile (grid of 1) -- kernel is launch-overhead-bound.
    - B  > 128: 256-row tiles (matches v6e/v7x 256x256 MXU); fall back to 128
      when that would leave only one grid step, so v7x's two TensorCores both
      get work.
    """
    if B <= 128:
        return _round_up(B, 8)
    tile = 256
    if _round_up(B, tile) // tile < 2:
        tile = 128
    return tile


def decoder_forward(z, params, *, batch_tile=None):
    """z: [B, latent].  params: dict with w1,b1,w2,b2,w3,b3 (weights (in,out))."""
    B, latent = z.shape
    # Weights in bf16 for the MXU + halved DMA bytes; biases stay fp32.
    w1 = params["w1"].astype(jnp.bfloat16)
    w2 = params["w2"].astype(jnp.bfloat16)
    w3 = params["w3"].astype(jnp.bfloat16)
    b1 = params["b1"].astype(jnp.float32)
    b2 = params["b2"].astype(jnp.float32)
    b3 = params["b3"].astype(jnp.float32)
    h1 = w1.shape[1]
    h2 = w2.shape[1]
    out_size = w3.shape[1]

    if batch_tile is None:
        batch_tile = _choose_batch_tile(B)
    batch_tile = _round_up(batch_tile, 8)

    # Pad ragged batches up to a tile multiple; padded rows are sliced off below.
    Bp = _round_up(B, batch_tile)
    if Bp != B:
        z = jnp.pad(z, ((0, Bp - B), (0, 0)))
    grid = (Bp // batch_tile,)

    # Per-step VMEM estimate: double-buffered z/out, fp32 intermediates,
    # resident bf16 weights.  Only raise the scoped VMEM limit if we actually
    # need it (defaults: 16 MiB v5e / 32 MiB v6e+); cap at 40 MiB so tiles
    # tuned here stay safe on v7x's 64 MiB physical VMEM.
    vmem_est = (
        2 * batch_tile * (latent + out_size) * 4          # streamed z / out (f32)
        + batch_tile * (h1 + h2 + out_size) * 4           # intermediates (f32)
        + (latent * h1 + h1 * h2 + h2 * out_size) * 2     # resident bf16 weights
        + (h1 + h2 + out_size) * 4                        # biases
    )
    cp_kwargs = dict(dimension_semantics=("parallel",))
    if vmem_est > (12 << 20):
        cp_kwargs["vmem_limit_bytes"] = int(min(vmem_est * 2, 40 << 20))

    # Weights/biases are replicated across the batch grid (constant index_map
    # -> resident in VMEM, no re-DMA across grid steps).
    weight_spec = lambda shape: pl.BlockSpec(shape, lambda i: (0, 0))

    out = pl.pallas_call(
        decoder_kernel,
        out_shape=jax.ShapeDtypeStruct((Bp, out_size), z.dtype),
        grid_spec=pltpu.PrefetchScalarGridSpec(
            num_scalar_prefetch=0,
            grid=grid,
            in_specs=[
                pl.BlockSpec((batch_tile, latent), lambda i: (i, 0)),  # z tile
                weight_spec((latent, h1)),
                weight_spec((1, h1)),
                weight_spec((h1, h2)),
                weight_spec((1, h2)),
                weight_spec((h2, out_size)),
                weight_spec((1, out_size)),
            ],
            out_specs=pl.BlockSpec((batch_tile, out_size), lambda i: (i, 0)),
        ),
        compiler_params=pltpu.CompilerParams(**cp_kwargs),
    )(z, w1, b1, w2, b2, w3, b3)

    if Bp != B:
        out = out[:B]
    return out


def init_decoder_params(key, latent_size, out_size, dtype=jnp.float32):
    """Deterministic init. Weight shapes follow (in_features, out_features)."""
    h1 = out_size // 4
    h2 = out_size // 2
    keys = jax.random.split(key, 6)

    def linear_init(kw, kb, fan_in, fan_out):
        # Match PyTorch nn.Linear default: U(-1/sqrt(fan_in), 1/sqrt(fan_in))
        bound = 1.0 / jnp.sqrt(fan_in)
        w = jax.random.uniform(kw, (fan_in, fan_out), dtype, -bound, bound)
        b = jax.random.uniform(kb, (1, fan_out), dtype, -bound, bound)
        return w, b

    w1, b1 = linear_init(keys[0], keys[1], latent_size, h1)
    w2, b2 = linear_init(keys[2], keys[3], h1, h2)
    w3, b3 = linear_init(keys[4], keys[5], h2, out_size)
    return {"w1": w1, "b1": b1, "w2": w2, "b2": b2, "w3": w3, "b3": b3}


def decoder_reference(z, p):
    """Pure-JAX reference mimicking the kernel's bf16-operand / fp32-accumulate math."""
    def mm(x, w):
        return jnp.dot(x.astype(jnp.bfloat16), w.astype(jnp.bfloat16),
                       preferred_element_type=jnp.float32)
    h = jnp.maximum(mm(z, p["w1"]) + p["b1"], 0.0)
    h = jnp.maximum(mm(h, p["w2"]) + p["b2"], 0.0)
    return jax.nn.sigmoid(mm(h, p["w3"]) + p["b3"])


if __name__ == "__main__":
    latent_size = 32
    out_size = 512       # -> hidden sizes 128 and 256
    batch = 8

    key = jax.random.PRNGKey(0)
    k_param, k_data = jax.random.split(key)
    params = init_decoder_params(k_param, latent_size, out_size)
    z = jax.random.normal(k_data, (batch, latent_size), dtype=jnp.float32)

    out = decoder_forward(z, params)
    out = jax.block_until_ready(out)

    ref = decoder_reference(z, params)
    assert out.shape == (batch, out_size)
    # bf16 matmuls + approx reciprocal sigmoid -> modest tolerance vs reference.
    assert jnp.allclose(out, ref, atol=5e-3, rtol=5e-3), "mismatch vs reference"

    print("KERNEL_OK")
</pallas_src>

<mosaic_0001>
module attributes {stable_mosaic.version = 11 : i64} {
  func.func @decoder_kernel(%arg0: i32, %arg1: memref<8x32xf32, #tpu.memory_space<vmem>>, %arg2: memref<32x128xbf16, #tpu.memory_space<vmem>>, %arg3: memref<1x128xf32, #tpu.memory_space<vmem>>, %arg4: memref<128x256xbf16, #tpu.memory_space<vmem>>, %arg5: memref<1x256xf32, #tpu.memory_space<vmem>>, %arg6: memref<256x512xbf16, #tpu.memory_space<vmem>>, %arg7: memref<1x512xf32, #tpu.memory_space<vmem>>, %arg8: memref<8x512xf32, #tpu.memory_space<vmem>>) attributes {dimension_semantics = [#tpu.dimension_semantics<parallel>], iteration_bounds = array<i64: 1>, scalar_prefetch = 0 : i64, scratch_operands = 0 : i64, tpu.core_type = #tpu.core_type<tc>, window_params = [{transform_indices = @transform_0, window_bounds = array<i64: 8, 32>}, {pipeline_mode = #tpu.pipeline_mode<synchronous>, transform_indices = @transform_1, window_bounds = array<i64: 32, 128>}, {pipeline_mode = #tpu.pipeline_mode<synchronous>, transform_indices = @transform_2, window_bounds = array<i64: 1, 128>}, {pipeline_mode = #tpu.pipeline_mode<synchronous>, transform_indices = @transform_3, window_bounds = array<i64: 128, 256>}, {pipeline_mode = #tpu.pipeline_mode<synchronous>, transform_indices = @transform_4, window_bounds = array<i64: 1, 256>}, {pipeline_mode = #tpu.pipeline_mode<synchronous>, transform_indices = @transform_5, window_bounds = array<i64: 256, 512>}, {pipeline_mode = #tpu.pipeline_mode<synchronous>, transform_indices = @transform_6, window_bounds = array<i64: 1, 512>}, {transform_indices = @transform_7, window_bounds = array<i64: 8, 512>}]} {
    %c0 = arith.constant 0 : index
    %c0_0 = arith.constant 0 : index
    %0 = vector.load %arg1[%c0, %c0_0] : memref<8x32xf32, #tpu.memory_space<vmem>>, vector<8x32xf32>
    %1 = arith.truncf %0 : vector<8x32xf32> to vector<8x32xbf16>
    %c0_1 = arith.constant 0 : index
    %c0_2 = arith.constant 0 : index
    %2 = vector.load %arg2[%c0_1, %c0_2] : memref<32x128xbf16, #tpu.memory_space<vmem>>, vector<32x128xbf16>
    %cst = arith.constant dense<0.000000e+00> : vector<8x128xf32>
    %3 = tpu.matmul %1, %2, %cst {dimension_numbers = #tpu.dot_dimension_numbers<[1], [0], [0], [1], [0, 0, 1, 1], [], []>} : vector<8x32xbf16>, vector<32x128xbf16>, vector<8x128xf32> -> vector<8x128xf32>
    %c0_3 = arith.constant 0 : index
    %c0_4 = arith.constant 0 : index
    %4 = vector.load %arg3[%c0_3, %c0_4] : memref<1x128xf32, #tpu.memory_space<vmem>>, vector<1x128xf32>
    %5 = vector.broadcast %4 : vector<1x128xf32> to vector<8x128xf32>
    %6 = arith.addf %3, %5 : vector<8x128xf32>
    %cst_5 = arith.constant 0.000000e+00 : f32
    %7 = vector.broadcast %cst_5 : f32 to vector<8x128xf32>
    %8 = arith.maximumf %6, %7 : vector<8x128xf32>
    %9 = arith.truncf %8 : vector<8x128xf32> to vector<8x128xbf16>
    %c0_6 = arith.constant 0 : index
    %c0_7 = arith.constant 0 : index
    %10 = vector.load %arg4[%c0_6, %c0_7] : memref<128x256xbf16, #tpu.memory_space<vmem>>, vector<128x256xbf16>
    %cst_8 = arith.constant dense<0.000000e+00> : vector<8x256xf32>
    %11 = tpu.matmul %9, %10, %cst_8 {dimension_numbers = #tpu.dot_dimension_numbers<[1], [0], [0], [1], [0, 0, 1, 1], [], []>} : vector<8x128xbf16>, vector<128x256xbf16>, vector<8x256xf32> -> vector<8x256xf32>
    %c0_9 = arith.constant 0 : index
    %c0_10 = arith.constant 0 : index
    %12 = vector.load %arg5[%c0_9, %c0_10] : memref<1x256xf32, #tpu.memory_space<vmem>>, vector<1x256xf32>
    %13 = vector.broadcast %12 : vector<1x256xf32> to vector<8x256xf32>
    %14 = arith.addf %11, %13 : vector<8x256xf32>
    %cst_11 = arith.constant 0.000000e+00 : f32
    %15 = vector.broadcast %cst_11 : f32 to vector<8x256xf32>
    %16 = arith.maximumf %14, %15 : vector<8x256xf32>
    %17 = arith.truncf %16 : vector<8x256xf32> to vector<8x256xbf16>
    %c0_12 = arith.constant 0 : index
    %c0_13 = arith.constant 0 : index
    %18 = vector.load %arg6[%c0_12, %c0_13] : memref<256x512xbf16, #tpu.memory_space<vmem>>, vector<256x512xbf16>
    %cst_14 = arith.constant dense<0.000000e+00> : vector<8x512xf32>
    %19 = tpu.matmul %17, %18, %cst_14 {dimension_numbers = #tpu.dot_dimension_numbers<[1], [0], [0], [1], [0, 0, 1, 1], [], []>} : vector<8x256xbf16>, vector<256x512xbf16>, vector<8x512xf32> -> vector<8x512xf32>
    %c0_15 = arith.constant 0 : index
    %c0_16 = arith.constant 0 : index
    %20 = vector.load %arg7[%c0_15, %c0_16] : memref<1x512xf32, #tpu.memory_space<vmem>>, vector<1x512xf32>
    %21 = vector.broadcast %20 : vector<1x512xf32> to vector<8x512xf32>
    %22 = arith.addf %19, %21 : vector<8x512xf32>
    %cst_17 = arith.constant 0.000000e+00 : f32
    %23 = vector.broadcast %cst_17 : f32 to vector<8x512xf32>
    %24 = arith.subf %23, %22 : vector<8x512xf32>
    %25 = math.exp %24 : vector<8x512xf32>
    %cst_18 = arith.constant 1.000000e+00 : f32
    %26 = vector.broadcast %cst_18 : f32 to vector<8x512xf32>
    %27 = arith.addf %26, %25 : vector<8x512xf32>
    %28 = tpu.reciprocal %27 {approx = true} : vector<8x512xf32> -> vector<8x512xf32>
    %c0_19 = arith.constant 0 : index
    %c0_20 = arith.constant 0 : index
    %29 = vector.load %arg8[%c0_19, %c0_20] : memref<8x512xf32, #tpu.memory_space<vmem>>, vector<8x512xf32>
    tpu.vector_store %arg8[%c0_19, %c0_20], %28 {strides = array<i32>} : memref<8x512xf32, #tpu.memory_space<vmem>>, vector<8x512xf32>,
    return
  }
  func.func @transform_0(%arg0: i32) -> (i32, i32) {
    %c0_i32 = arith.constant 0 : i32
    %c0_i32_0 = arith.constant 0 : i32
    return %arg0, %c0_i32 : i32, i32
  }
  func.func @transform_1(%arg0: i32) -> (i32, i32) {
    %c0_i32 = arith.constant 0 : i32
    %c0_i32_0 = arith.constant 0 : i32
    %c0_i32_1 = arith.constant 0 : i32
    return %c0_i32, %c0_i32_0 : i32, i32
  }
  func.func @transform_2(%arg0: i32) -> (i32, i32) {
    %c0_i32 = arith.constant 0 : i32
    %c0_i32_0 = arith.constant 0 : i32
    %c0_i32_1 = arith.constant 0 : i32
    return %c0_i32, %c0_i32_0 : i32, i32
  }
  func.func @transform_3(%arg0: i32) -> (i32, i32) {
    %c0_i32 = arith.constant 0 : i32
    %c0_i32_0 = arith.constant 0 : i32
    %c0_i32_1 = arith.constant 0 : i32
    return %c0_i32, %c0_i32_0 : i32, i32
  }
  func.func @transform_4(%arg0: i32) -> (i32, i32) {
    %c0_i32 = arith.constant 0 : i32
    %c0_i32_0 = arith.constant 0 : i32
    %c0_i32_1 = arith.constant 0 : i32
    return %c0_i32, %c0_i32_0 : i32, i32
  }
  func.func @transform_5(%arg0: i32) -> (i32, i32) {
    %c0_i32 = arith.constant 0 : i32
    %c0_i32_0 = arith.constant 0 : i32
    %c0_i32_1 = arith.constant 0 : i32
    return %c0_i32, %c0_i32_0 : i32, i32
  }
  func.func @transform_6(%arg0: i32) -> (i32, i32) {
    %c0_i32 = arith.constant 0 : i32
    %c0_i32_0 = arith.constant 0 : i32
    %c0_i32_1 = arith.constant 0 : i32
    return %c0_i32, %c0_i32_0 : i32, i32
  }
  func.func @transform_7(%arg0: i32) -> (i32, i32) {
    %c0_i32 = arith.constant 0 : i32
    %c0_i32_0 = arith.constant 0 : i32
    return %arg0, %c0_i32 : i32, i32
  }
}

</mosaic_0001>

<llo_original>
// kernel: tpu_custom_call.1
$region0: #{tpu_custom_call.1}
  #allocation0 [shape = 'u32[]', space=smem, size = 0x4, offset = 0x4, fixed_abs, tag = 'smem constant byte address 0x4 - core index']
  #allocation1 [shape = 'u32[144,128]{1,0:T(1,128)}', space=vmem, size = 0x12000, scoped, tag = 'internal scratch']
  %s0 = inlined_call_operand.hbm [shape: f32[8,32], index: 0, kind: input, shape index: {}]
  %s1 = inlined_call_operand.hbm [shape: bf16[32,128], index: 1, kind: input, shape index: {}]
  %s2 = inlined_call_operand.vmem [shape: f32[1,128], index: 2, kind: input, shape index: {}]
  %s3 = inlined_call_operand.hbm [shape: bf16[128,256], index: 3, kind: input, shape index: {}]
  %s4 = inlined_call_operand.vmem [shape: f32[1,256], index: 4, kind: input, shape index: {}]
  %s5 = inlined_call_operand.hbm [shape: bf16[256,512], index: 5, kind: input, shape index: {}]
  %s6 = inlined_call_operand.vmem [shape: f32[1,512], index: 6, kind: input, shape index: {}]
  %s7 = inlined_call_operand.hbm [shape: f32[8,512], index: 7, kind: output, shape index: {}]
  %s8 = sld [smem:[#allocation0]]
  $region54: #{tpu_custom_call.1} parent=0
    _
  %s10 = ssub.s32 1, %s8
  %s11 = scalar_select 0, %s10, %s8
  $region1: #{tpu_custom_call.1} parent=0
    #allocation2 [shape = 'u8[4096]{0}', space=vmem, size = 0x1000, scoped, tag = 'input window, operand 0, single buffered']
    #allocation3 [shape = 's32[1]{0}', space=sflag, size = 0x4, scoped, tag = 'scoped memory for tpu_custom_call.1']
    #allocation4 [shape = 's32[1]{0}', space=sflag, size = 0x4, scoped, tag = 'scoped memory for tpu_custom_call.1']
    #allocation5 [shape = 'u8[8192]{0}', space=vmem, size = 0x2000, scoped, tag = 'input window, operand 1, single buffered']
    #allocation6 [shape = 's32[1]{0}', space=sflag, size = 0x4, scoped, tag = 'scoped memory for tpu_custom_call.1']
    #allocation7 [shape = 'u8[65536]{0}', space=vmem, size = 0x10000, scoped, tag = 'input window, operand 3, single buffered']
    #allocation8 [shape = 'u8[262144]{0}', space=vmem, size = 0x40000, scoped, tag = 'input window, operand 5, single buffered']
    #allocation9 [shape = 's32[1]{0}', space=sflag, size = 0x4, scoped, tag = 'scoped memory for tpu_custom_call.1']
    #allocation10 [shape = 'u8[16384]{0}', space=vmem, size = 0x4000, scoped, tag = 'output window, operand 0, single buffered']
    %12 = vsyncpa [#allocation3], 0
    %13 = vsyncpa [#allocation6], 0
    %14 = vsyncpa [#allocation9], 0
    %15 = vsyncpa [#allocation4], 0
    // Predicated region
    $region2: #{tpu_custom_call.1} parent=1 // pred_check
      _
    $region3: #{tpu_custom_call.1} parent=1 // pred_check_branch
      %17 = sbr.rel (0) target = $region5
    $region4: #{tpu_custom_call.1} parent=1 // pred_region
      %s19 = ssub.s32 128, 128
      %20 = vsyncadd [#allocation3], %s19
      %s22 = sshll.u32 [#allocation2], 4
      %s23 = int_to_ptr.vmem [resolvable:$true] %s22
      %25 = dma.hbm_to_vmem [thread:$0]  %s0, 128, %s23, [#allocation3]
    $region5: #{tpu_custom_call.1} parent=1 // pred_fallthru
      _
    // Predicated region
    $region6: #{tpu_custom_call.1} parent=1 // pred_check
      _
    $region7: #{tpu_custom_call.1} parent=1 // pred_check_branch
      %27 = sbr.rel (0) target = $region9
    $region8: #{tpu_custom_call.1} parent=1 // pred_region
      %s29 = ssub.s32 256, 256
      %30 = vsyncadd [#allocation6], %s29
      %s31 = sshll.u32 [#allocation5], 4
      %s32 = int_to_ptr.vmem [resolvable:$true] %s31
      %37 = dma.hbm_to_vmem [thread:$0]  %s1, 256, %s32, [#allocation6], 64, 64, 4
    $region9: #{tpu_custom_call.1} parent=1 // pred_fallthru
      _
    // Predicated region
    $region10: #{tpu_custom_call.1} parent=1 // pred_check
      _
    $region11: #{tpu_custom_call.1} parent=1 // pred_check_branch
      %39 = sbr.rel (0) target = $region13
    $region12: #{tpu_custom_call.1} parent=1 // pred_region
      _
    $region13: #{tpu_custom_call.1} parent=1 // pred_fallthru
      _
    // Predicated region
    $region14: #{tpu_custom_call.1} parent=1 // pred_check
      _
    $region15: #{tpu_custom_call.1} parent=1 // pred_check_branch
      %41 = sbr.rel (0) target = $region17
    $region16: #{tpu_custom_call.1} parent=1 // pred_region
      %s43 = ssub.s32 2048, 2048
      %44 = vsyncadd [#allocation6], %s43
      %s45 = sshll.u32 [#allocation7], 4
      %s46 = int_to_ptr.vmem [resolvable:$true] %s45
      %51 = dma.hbm_to_vmem [thread:$0]  %s3, 2048, %s46, [#allocation6], 128, 128, 8
    $region17: #{tpu_custom_call.1} parent=1 // pred_fallthru
      _
    // Predicated region
    $region18: #{tpu_custom_call.1} parent=1 // pred_check
      _
    $region19: #{tpu_custom_call.1} parent=1 // pred_check_branch
      %53 = sbr.rel (0) target = $region21
    $region20: #{tpu_custom_call.1} parent=1 // pred_region
      _
    $region21: #{tpu_custom_call.1} parent=1 // pred_fallthru
      _
    // Predicated region
    $region22: #{tpu_custom_call.1} parent=1 // pred_check
      _
    $region23: #{tpu_custom_call.1} parent=1 // pred_check_branch
      %55 = sbr.rel (0) target = $region25
    $region24: #{tpu_custom_call.1} parent=1 // pred_region
      %s57 = ssub.s32 8192, 8192
      %58 = vsyncadd [#allocation9], %s57
      %s59 = sshll.u32 [#allocation8], 4
      %s60 = int_to_ptr.vmem [resolvable:$true] %s59
      %65 = dma.hbm_to_vmem [thread:$0]  %s5, 8192, %s60, [#allocation9], 256, 256, 16
    $region25: #{tpu_custom_call.1} parent=1 // pred_fallthru
      _
    // Predicated region
    $region26: #{tpu_custom_call.1} parent=1 // pred_check
      _
    $region27: #{tpu_custom_call.1} parent=1 // pred_check_branch
      %67 = sbr.rel (0) target = $region29
    $region28: #{tpu_custom_call.1} parent=1 // pred_region
      _
    $region29: #{tpu_custom_call.1} parent=1 // pred_fallthru
      _
    // Predicated region
    $region30: #{tpu_custom_call.1} parent=1 // pred_check
      _
    $region31: #{tpu_custom_call.1} parent=1 // pred_check_branch
      %69 = sbr.rel (0) target = $region33
    $region32: #{tpu_custom_call.1} parent=1 // pred_region
      %70 = dma.done [#allocation3], 128
    $region33: #{tpu_custom_call.1} parent=1 // pred_fallthru
      _
    // Predicated region
    $region34: #{tpu_custom_call.1} parent=1 // pred_check
      _
    $region35: #{tpu_custom_call.1} parent=1 // pred_check_branch
      %72 = sbr.rel (0) target = $region37
    $region36: #{tpu_custom_call.1} parent=1 // pred_region
      %73 = dma.done [#allocation6], 256
    $region37: #{tpu_custom_call.1} parent=1 // pred_fallthru
      _
    // Predicated region
    $region38: #{tpu_custom_call.1} parent=1 // pred_check
      _
    $region39: #{tpu_custom_call.1} parent=1 // pred_check_branch
      %75 = sbr.rel (0) target = $region41
    $region40: #{tpu_custom_call.1} parent=1 // pred_region
      %76 = dma.done [#allocation6], 2048
    $region41: #{tpu_custom_call.1} parent=1 // pred_fallthru
      _
    // Predicated region
    $region42: #{tpu_custom_call.1} parent=1 // pred_check
      _
    $region43: #{tpu_custom_call.1} parent=1 // pred_check_branch
      %78 = sbr.rel (0) target = $region45
    $region44: #{tpu_custom_call.1} parent=1 // pred_region
      %79 = dma.done [#allocation9], 8192
    $region45: #{tpu_custom_call.1} parent=1 // pred_fallthru
      _
    %v81 = vld [vmem:[#allocation2] sm:$0xff]
    %v82 = vpack.c.bf16 %v81, %v81
    %v83 = vld [vmem:[#allocation5] sm:$0xf]
    %v84 = vld [vmem:[#allocation5 + $0x4] sm:$0xf]
    %v85 = vld [vmem:[#allocation5 + $0x8] sm:$0xf]
    %v86 = vld [vmem:[#allocation5 + $0xc] sm:$0xf]
    %v87 = vld [vmem:[%s2] sm:$0x1]
    %v89 = vlaneseq
    %v90 = vshrl.u32 %v89, 7
    %v91 = vsub.s32 0, %v90
    %v92 = vrot.slane %v87, %v91
    %v98 = vunpack.c.l.b16 %v83
    %v99 = vunpack.c.l.b16 %v84
    %v100 = vunpack.c.l.b16 %v85
    %v101 = vunpack.c.l.b16 %v86
    %v102 = vpack.c.b16 %v99, %v98
    %v103 = vpack.c.b16 %v101, %v100
    %vm106 = vcmask 261120
    %v108 = vsel %vm106, %v82, 0
    %110 = vmatprep.subr.bf16.mxu0 0
    %111 = vmatpush1.bf16.msra.mxu0 %v102
    %112 = vmatprep.subr.bf16.mxu0 0
    %113 = vmatpush1.bf16.msra.mxu0 %v103
    %114 = vmatprep.subr.bf16.mxu0 0
    %115 = vmatpush1.bf16.msra.mxu0 0
    %116 = vmatprep.subr.bf16.mxu0 0
    %117 = vmatpush1.bf16.msra.mxu0 0
    %118 = vmatprep.subr.bf16.mxu0 0
    %119 = vmatpush1.bf16.msra.mxu0 0
    %120 = vmatprep.subr.bf16.mxu0 0
    %121 = vmatpush1.bf16.msra.mxu0 0
    %122 = vmatprep.subr.bf16.mxu0 0
    %123 = vmatpush1.bf16.msra.mxu0 0
    %124 = vmatprep.subr.bf16.mxu0 0
    %125 = vmatpush1.bf16.msra.mxu0 0
    %126 = vmatprep.subr.bf16.mxu0 0
    %127 = vmatpush1.bf16.msra.mxu0 0
    %128 = vmatprep.subr.bf16.mxu0 0
    %129 = vmatpush1.bf16.msra.mxu0 0
    %130 = vmatprep.subr.bf16.mxu0 0
    %131 = vmatpush1.bf16.msra.mxu0 0
    %132 = vmatprep.subr.bf16.mxu0 0
    %133 = vmatpush1.bf16.msra.mxu0 0
    %134 = vmatprep.subr.bf16.mxu0 0
    %135 = vmatpush1.bf16.msra.mxu0 0
    %136 = vmatprep.subr.bf16.mxu0 0
    %137 = vmatpush1.bf16.msra.mxu0 0
    %138 = vmatprep.subr.bf16.mxu0 0
    %139 = vmatpush1.bf16.msra.mxu0 0
    %140 = vmatprep.subr.bf16.mxu0 0
    %141 = vmatpush1.bf16.msra.mxu0 0
    %142 = vmatprep.mubr.bf16.mxu0 0
    %143 = vmatmul.mubr.bf16.gmra.mrb[0].mxu0 %v108
    %v144 = vpop.f32.mrb[0].mxu0
    %v145 = vadd.f32 %v92, %v144
    %v146 = vpop.f32.mrb[0].mxu0
    %v147 = vpop.f32.mrb[0].mxu0
    %v148 = vpop.f32.mrb[0].mxu0
    %149 = vdwg.mxu0
    %v150 = vmax.f32 %v145, 0.0
    %v151 = vpack.c.bf16 %v150, %v150
    %v152 = vld [vmem:[#allocation7] sm:$0xff]
    %v153 = vld [vmem:[#allocation7 + $0x8] sm:$0xff]
    %v154 = vld [vmem:[#allocation7 + $0x10] sm:$0xff]
    %v155 = vld [vmem:[#allocation7 + $0x18] sm:$0xff]
    %v156 = vld [vmem:[#allocation7 + $0x20] sm:$0xff]
    %v157 = vld [vmem:[#allocation7 + $0x28] sm:$0xff]
    %v158 = vld [vmem:[#allocation7 + $0x30] sm:$0xff]
    %v159 = vld [vmem:[#allocation7 + $0x38] sm:$0xff]
    %v160 = vld [vmem:[#allocation7 + $0x40] sm:$0xff]
    %v161 = vld [vmem:[#allocation7 + $0x48] sm:$0xff]
    %v162 = vld [vmem:[#allocation7 + $0x50] sm:$0xff]
    %v163 = vld [vmem:[#allocation7 + $0x58] sm:$0xff]
    %v164 = vld [vmem:[#allocation7 + $0x60] sm:$0xff]
    %v165 = vld [vmem:[#allocation7 + $0x68] sm:$0xff]
    %v166 = vld [vmem:[#allocation7 + $0x70] sm:$0xff]
    %v167 = vld [vmem:[#allocation7 + $0x78] sm:$0xff]
    %v168 = vld [vmem:[%s4] sm:$0x3]
    %v170 = vlaneseq
    %v171 = vshrl.u32 %v170, 7
    %v172 = vsub.s32 0, %v171
    %v173 = vrot.slane %v168, %v172
    %v174 = vlaneseq
    %v175 = vshrl.u32 %v174, 7
    %v176 = vsub.s32 1, %v175
    %v177 = vrot.slane %v168, %v176
    %v196 = vunpack.c.l.b16 %v152
    %v197 = vunpack.c.h.b16 %v152
    %v198 = vunpack.c.l.b16 %v153
    %v199 = vunpack.c.h.b16 %v153
    %v200 = vunpack.c.l.b16 %v154
    %v201 = vunpack.c.h.b16 %v154
    %v202 = vunpack.c.l.b16 %v155
    %v203 = vunpack.c.h.b16 %v155
    %v204 = vunpack.c.l.b16 %v156
    %v205 = vunpack.c.h.b16 %v156
    %v206 = vunpack.c.l.b16 %v157
    %v207 = vunpack.c.h.b16 %v157
    %v208 = vunpack.c.l.b16 %v158
    %v209 = vunpack.c.h.b16 %v158
    %v210 = vunpack.c.l.b16 %v159
    %v211 = vunpack.c.h.b16 %v159
    %v212 = vunpack.c.l.b16 %v160
    %v213 = vunpack.c.h.b16 %v160
    %v214 = vunpack.c.l.b16 %v161
    %v215 = vunpack.c.h.b16 %v161
    %v216 = vunpack.c.l.b16 %v162
    %v217 = vunpack.c.h.b16 %v162
    %v218 = vunpack.c.l.b16 %v163
    %v219 = vunpack.c.h.b16 %v163
    %v220 = vunpack.c.l.b16 %v164
    %v221 = vunpack.c.h.b16 %v164
    %v222 = vunpack.c.l.b16 %v165
    %v223 = vunpack.c.h.b16 %v165
    %v224 = vunpack.c.l.b16 %v166
    %v225 = vunpack.c.h.b16 %v166
    %v226 = vunpack.c.l.b16 %v167
    %v227 = vunpack.c.h.b16 %v167
    %v228 = vpack.c.b16 %v198, %v196
    %v229 = vpack.c.b16 %v199, %v197
    %v230 = vpack.c.b16 %v202, %v200
    %v231 = vpack.c.b16 %v203, %v201
    %v232 = vpack.c.b16 %v206, %v204
    %v233 = vpack.c.b16 %v207, %v205
    %v234 = vpack.c.b16 %v210, %v208
    %v235 = vpack.c.b16 %v211, %v209
    %v236 = vpack.c.b16 %v214, %v212
    %v237 = vpack.c.b16 %v215, %v213
    %v238 = vpack.c.b16 %v218, %v216
    %v239 = vpack.c.b16 %v219, %v217
    %v240 = vpack.c.b16 %v222, %v220
    %v241 = vpack.c.b16 %v223, %v221
    %v242 = vpack.c.b16 %v226, %v224
    %v243 = vpack.c.b16 %v227, %v225
    %260 = vmatprep.subr.bf16.mxu0 %v229
    %261 = vmatpush1.bf16.msra.mxu0 %v228
    %262 = vmatprep.subr.bf16.mxu0 %v231
    %263 = vmatpush1.bf16.msra.mxu0 %v230
    %264 = vmatprep.subr.bf16.mxu0 %v233
    %265 = vmatpush1.bf16.msra.mxu0 %v232
    %266 = vmatprep.subr.bf16.mxu0 %v235
    %267 = vmatpush1.bf16.msra.mxu0 %v234
    %268 = vmatprep.subr.bf16.mxu0 %v237
    %269 = vmatpush1.bf16.msra.mxu0 %v236
    %270 = vmatprep.subr.bf16.mxu0 %v239
    %271 = vmatpush1.bf16.msra.mxu0 %v238
    %272 = vmatprep.subr.bf16.mxu0 %v241
    %273 = vmatpush1.bf16.msra.mxu0 %v240
    %274 = vmatprep.subr.bf16.mxu0 %v243
    %275 = vmatpush1.bf16.msra.mxu0 %v242
    %276 = vmatprep.subr.bf16.mxu0 0
    %277 = vmatpush1.bf16.msra.mxu0 0
    %278 = vmatprep.subr.bf16.mxu0 0
    %279 = vmatpush1.bf16.msra.mxu0 0
    %280 = vmatprep.subr.bf16.mxu0 0
    %281 = vmatpush1.bf16.msra.mxu0 0
    %282 = vmatprep.subr.bf16.mxu0 0
    %283 = vmatpush1.bf16.msra.mxu0 0
    %284 = vmatprep.subr.bf16.mxu0 0
    %285 = vmatpush1.bf16.msra.mxu0 0
    %286 = vmatprep.subr.bf16.mxu0 0
    %287 = vmatpush1.bf16.msra.mxu0 0
    %288 = vmatprep.subr.bf16.mxu0 0
    %289 = vmatpush1.bf16.msra.mxu0 0
    %290 = vmatprep.subr.bf16.mxu0 0
    %291 = vmatpush1.bf16.msra.mxu0 0
    %292 = vmatprep.mubr.bf16.mxu0 0
    %293 = vmatmul.mubr.bf16.gmra.mrb[0].mxu0 %v151
    %v294 = vpop.f32.mrb[0].mxu0
    %v295 = vadd.f32 %v173, %v294
    %v296 = vpop.f32.mrb[0].mxu0
    %v297 = vadd.f32 %v177, %v296
    %v298 = vpop.f32.mrb[0].mxu0
    %v299 = vpop.f32.mrb[0].mxu0
    %300 = vdwg.mxu0
    %v301 = vmax.f32 %v295, 0.0
    %v302 = vmax.f32 %v297, 0.0
    %v303 = vpack.c.bf16 %v301, %v301
    %v304 = vpack.c.bf16 %v302, %v302
    %v305 = vld [vmem:[#allocation8] sm:$0xff]
    %v306 = vld [vmem:[#allocation8 + $0x8] sm:$0xff]
    %v307 = vld [vmem:[#allocation8 + $0x10] sm:$0xff]
    %v308 = vld [vmem:[#allocation8 + $0x18] sm:$0xff]
    %v309 = vld [vmem:[#allocation8 + $0x20] sm:$0xff]
    %v310 = vld [vmem:[#allocation8 + $0x28] sm:$0xff]
    %v311 = vld [vmem:[#allocation8 + $0x30] sm:$0xff]
    %v312 = vld [vmem:[#allocation8 + $0x38] sm:$0xff]
    %v313 = vld [vmem:[#allocation8 + $0x40] sm:$0xff]
    %v314 = vld [vmem:[#allocation8 + $0x48] sm:$0xff]
    %v315 = vld [vmem:[#allocation8 + $0x50] sm:$0xff]
    %v316 = vld [vmem:[#allocation8 + $0x58] sm:$0xff]
    %v317 = vld [vmem:[#allocation8 + $0x60] sm:$0xff]
    %v318 = vld [vmem:[#allocation8 + $0x68] sm:$0xff]
    %v319 = vld [vmem:[#allocation8 + $0x70] sm:$0xff]
    %v320 = vld [vmem:[#allocation8 + $0x78] sm:$0xff]
    %v321 = vld [vmem:[#allocation8 + $0x80] sm:$0xff]
    %v322 = vld [vmem:[#allocation8 + $0x88] sm:$0xff]
    %v323 = vld [vmem:[#allocation8 + $0x90] sm:$0xff]
    %v324 = vld [vmem:[#allocation8 + $0x98] sm:$0xff]
    %v325 = vld [vmem:[#allocation8 + $0xa0] sm:$0xff]
    %v326 = vld [vmem:[#allocation8 + $0xa8] sm:$0xff]
    %v327 = vld [vmem:[#allocation8 + $0xb0] sm:$0xff]
    %v328 = vld [vmem:[#allocation8 + $0xb8] sm:$0xff]
    %v329 = vld [vmem:[#allocation8 + $0xc0] sm:$0xff]
    %v330 = vld [vmem:[#allocation8 + $0xc8] sm:$0xff]
    %v331 = vld [vmem:[#allocation8 + $0xd0] sm:$0xff]
    %v332 = vld [vmem:[#allocation8 + $0xd8] sm:$0xff]
    %v333 = vld [vmem:[#allocation8 + $0xe0] sm:$0xff]
    %v334 = vld [vmem:[#allocation8 + $0xe8] sm:$0xff]
    %v335 = vld [vmem:[#allocation8 + $0xf0] sm:$0xff]
    %v336 = vld [vmem:[#allocation8 + $0xf8] sm:$0xff]
    %v337 = vld [vmem:[#allocation8 + $0x100] sm:$0xff]
    %v338 = vld [vmem:[#allocation8 + $0x108] sm:$0xff]
    %v339 = vld [vmem:[#allocation8 + $0x110] sm:$0xff]
    %v340 = vld [vmem:[#allocation8 + $0x118] sm:$0xff]
    %v341 = vld [vmem:[#allocation8 + $0x120] sm:$0xff]
    %v342 = vld [vmem:[#allocation8 + $0x128] sm:$0xff]
    %v343 = vld [vmem:[#allocation8 + $0x130] sm:$0xff]
    %v344 = vld [vmem:[#allocation8 + $0x138] sm:$0xff]
    %v345 = vld [vmem:[#allocation8 + $0x140] sm:$0xff]
    %v346 = vld [vmem:[#allocation8 + $0x148] sm:$0xff]
    %v347 = vld [vmem:[#allocation8 + $0x150] sm:$0xff]
    %v348 = vld [vmem:[#allocation8 + $0x158] sm:$0xff]
    %v349 = vld [vmem:[#allocation8 + $0x160] sm:$0xff]
    %v350 = vld [vmem:[#allocation8 + $0x168] sm:$0xff]
    %v351 = vld [vmem:[#allocation8 + $0x170] sm:$0xff]
    %v352 = vld [vmem:[#allocation8 + $0x178] sm:$0xff]
    %v353 = vld [vmem:[#allocation8 + $0x180] sm:$0xff]
    %v354 = vld [vmem:[#allocation8 + $0x188] sm:$0xff]
    %v355 = vld [vmem:[#allocation8 + $0x190] sm:$0xff]
    %v356 = vld [vmem:[#allocation8 + $0x198] sm:$0xff]
    %v357 = vld [vmem:[#allocation8 + $0x1a0] sm:$0xff]
    %v358 = vld [vmem:[#allocation8 + $0x1a8] sm:$0xff]
    %v359 = vld [vmem:[#allocation8 + $0x1b0] sm:$0xff]
    %v360 = vld [vmem:[#allocation8 + $0x1b8] sm:$0xff]
    %v361 = vld [vmem:[#allocation8 + $0x1c0] sm:$0xff]
    %v362 = vld [vmem:[#allocation8 + $0x1c8] sm:$0xff]
    %v363 = vld [vmem:[#allocation8 + $0x1d0] sm:$0xff]
    %v364 = vld [vmem:[#allocation8 + $0x1d8] sm:$0xff]
    %v365 = vld [vmem:[#allocation8 + $0x1e0] sm:$0xff]
    %v366 = vld [vmem:[#allocation8 + $0x1e8] sm:$0xff]
    %v367 = vld [vmem:[#allocation8 + $0x1f0] sm:$0xff]
    %v368 = vld [vmem:[#allocation8 + $0x1f8] sm:$0xff]
    %v369 = vld [vmem:[%s6] sm:$0xf]
    %v371 = vlaneseq
    %v372 = vshrl.u32 %v371, 7
    %v373 = vsub.s32 0, %v372
    %v374 = vrot.slane %v369, %v373
    %v375 = vlaneseq
    %v376 = vshrl.u32 %v375, 7
    %v377 = vsub.s32 1, %v376
    %v378 = vrot.slane %v369, %v377
    %v379 = vlaneseq
    %v380 = vshrl.u32 %v379, 7
    %v381 = vsub.s32 2, %v380
    %v382 = vrot.slane %v369, %v381
    %v383 = vlaneseq
    %v384 = vshrl.u32 %v383, 7
    %v385 = vsub.s32 3, %v384
    %v386 = vrot.slane %v369, %v385
    %v455 = vunpack.c.l.b16 %v305
    %v456 = vunpack.c.h.b16 %v305
    %v457 = vunpack.c.l.b16 %v306
    %v458 = vunpack.c.h.b16 %v306
    %v459 = vunpack.c.l.b16 %v307
    %v460 = vunpack.c.h.b16 %v307
    %v461 = vunpack.c.l.b16 %v308
    %v462 = vunpack.c.h.b16 %v308
    %v463 = vunpack.c.l.b16 %v309
    %v464 = vunpack.c.h.b16 %v309
    %v465 = vunpack.c.l.b16 %v310
    %v466 = vunpack.c.h.b16 %v310
    %v467 = vunpack.c.l.b16 %v311
    %v468 = vunpack.c.h.b16 %v311
    %v469 = vunpack.c.l.b16 %v312
    %v470 = vunpack.c.h.b16 %v312
    %v471 = vunpack.c.l.b16 %v313
    %v472 = vunpack.c.h.b16 %v313
    %v473 = vunpack.c.l.b16 %v314
    %v474 = vunpack.c.h.b16 %v314
    %v475 = vunpack.c.l.b16 %v315
    %v476 = vunpack.c.h.b16 %v315
    %v477 = vunpack.c.l.b16 %v316
    %v478 = vunpack.c.h.b16 %v316
    %v479 = vunpack.c.l.b16 %v317
    %v480 = vunpack.c.h.b16 %v317
    %v481 = vunpack.c.l.b16 %v318
    %v482 = vunpack.c.h.b16 %v318
    %v483 = vunpack.c.l.b16 %v319
    %v484 = vunpack.c.h.b16 %v319
    %v485 = vunpack.c.l.b16 %v320
    %v486 = vunpack.c.h.b16 %v320
    %v487 = vunpack.c.l.b16 %v321
    %v488 = vunpack.c.h.b16 %v321
    %v489 = vunpack.c.l.b16 %v322
    %v490 = vunpack.c.h.b16 %v322
    %v491 = vunpack.c.l.b16 %v323
    %v492 = vunpack.c.h.b16 %v323
    %v493 = vunpack.c.l.b16 %v324
    %v494 = vunpack.c.h.b16 %v324
    %v495 = vunpack.c.l.b16 %v325
    %v496 = vunpack.c.h.b16 %v325
    %v497 = vunpack.c.l.b16 %v326
    %v498 = vunpack.c.h.b16 %v326
    %v499 = vunpack.c.l.b16 %v327
    %v500 = vunpack.c.h.b16 %v327
    %v501 = vunpack.c.l.b16 %v328
    %v502 = vunpack.c.h.b16 %v328
    %v503 = vunpack.c.l.b16 %v329
    %v504 = vunpack.c.h.b16 %v329
    %v505 = vunpack.c.l.b16 %v330
    %v506 = vunpack.c.h.b16 %v330
    %v507 = vunpack.c.l.b16 %v331
    %v508 = vunpack.c.h.b16 %v331
    %v509 = vunpack.c.l.b16 %v332
    %v510 = vunpack.c.h.b16 %v332
    %v511 = vunpack.c.l.b16 %v333
    %v512 = vunpack.c.h.b16 %v333
    %v513 = vunpack.c.l.b16 %v334
    %v514 = vunpack.c.h.b16 %v334
    %v515 = vunpack.c.l.b16 %v335
    %v516 = vunpack.c.h.b16 %v335
    %v517 = vunpack.c.l.b16 %v336
    %v518 = vunpack.c.h.b16 %v336
    %v519 = vunpack.c.l.b16 %v337
    %v520 = vunpack.c.h.b16 %v337
    %v521 = vunpack.c.l.b16 %v338
    %v522 = vunpack.c.h.b16 %v338
    %v523 = vunpack.c.l.b16 %v339
    %v524 = vunpack.c.h.b16 %v339
    %v525 = vunpack.c.l.b16 %v340
    %v526 = vunpack.c.h.b16 %v340
    %v527 = vunpack.c.l.b16 %v341
    %v528 = vunpack.c.h.b16 %v341
    %v529 = vunpack.c.l.b16 %v342
    %v530 = vunpack.c.h.b16 %v342
    %v531 = vunpack.c.l.b16 %v343
    %v532 = vunpack.c.h.b16 %v343
    %v533 = vunpack.c.l.b16 %v344
    %v534 = vunpack.c.h.b16 %v344
    %v535 = vunpack.c.l.b16 %v345
    %v536 = vunpack.c.h.b16 %v345
    %v537 = vunpack.c.l.b16 %v346
    %v538 = vunpack.c.h.b16 %v346
    %v539 = vunpack.c.l.b16 %v347
    %v540 = vunpack.c.h.b16 %v347
    %v541 = vunpack.c.l.b16 %v348
    %v542 = vunpack.c.h.b16 %v348
    %v543 = vunpack.c.l.b16 %v349
    %v544 = vunpack.c.h.b16 %v349
    %v545 = vunpack.c.l.b16 %v350
    %v546 = vunpack.c.h.b16 %v350
    %v547 = vunpack.c.l.b16 %v351
    %v548 = vunpack.c.h.b16 %v351
    %v549 = vunpack.c.l.b16 %v352
    %v550 = vunpack.c.h.b16 %v352
    %v551 = vunpack.c.l.b16 %v353
    %v552 = vunpack.c.h.b16 %v353
    %v553 = vunpack.c.l.b16 %v354
    %v554 = vunpack.c.h.b16 %v354
    %v555 = vunpack.c.l.b16 %v355
    %v556 = vunpack.c.h.b16 %v355
    %v557 = vunpack.c.l.b16 %v356
    %v558 = vunpack.c.h.b16 %v356
    %v559 = vunpack.c.l.b16 %v357
    %v560 = vunpack.c.h.b16 %v357
    %v561 = vunpack.c.l.b16 %v358
    %v562 = vunpack.c.h.b16 %v358
    %v563 = vunpack.c.l.b16 %v359
    %v564 = vunpack.c.h.b16 %v359
    %v565 = vunpack.c.l.b16 %v360
    %v566 = vunpack.c.h.b16 %v360
    %v567 = vunpack.c.l.b16 %v361
    %v568 = vunpack.c.h.b16 %v361
    %v569 = vunpack.c.l.b16 %v362
    %v570 = vunpack.c.h.b16 %v362
    %v571 = vunpack.c.l.b16 %v363
    %v572 = vunpack.c.h.b16 %v363
    %v573 = vunpack.c.l.b16 %v364
    %v574 = vunpack.c.h.b16 %v364
    %v575 = vunpack.c.l.b16 %v365
    %v576 = vunpack.c.h.b16 %v365
    %v577 = vunpack.c.l.b16 %v366
    %v578 = vunpack.c.h.b16 %v366
    %v579 = vunpack.c.l.b16 %v367
    %v580 = vunpack.c.h.b16 %v367
    %v581 = vunpack.c.l.b16 %v368
    %v582 = vunpack.c.h.b16 %v368
    %v583 = vpack.c.b16 %v459, %v455
    %v584 = vpack.c.b16 %v460, %v456
    %v585 = vpack.c.b16 %v461, %v457
    %v586 = vpack.c.b16 %v462, %v458
    %v587 = vpack.c.b16 %v467, %v463
    %v588 = vpack.c.b16 %v468, %v464
    %v589 = vpack.c.b16 %v469, %v465
    %v590 = vpack.c.b16 %v470, %v466
    %v591 = vpack.c.b16 %v475, %v471
    %v592 = vpack.c.b16 %v476, %v472
    %v593 = vpack.c.b16 %v477, %v473
    %v594 = vpack.c.b16 %v478, %v474
    %v595 = vpack.c.b16 %v483, %v479
    %v596 = vpack.c.b16 %v484, %v480
    %v597 = vpack.c.b16 %v485, %v481
    %v598 = vpack.c.b16 %v486, %v482
    %v599 = vpack.c.b16 %v491, %v487
    %v600 = vpack.c.b16 %v492, %v488
    %v601 = vpack.c.b16 %v493, %v489
    %v602 = vpack.c.b16 %v494, %v490
    %v603 = vpack.c.b16 %v499, %v495
    %v604 = vpack.c.b16 %v500, %v496
    %v605 = vpack.c.b16 %v501, %v497
    %v606 = vpack.c.b16 %v502, %v498
    %v607 = vpack.c.b16 %v507, %v503
    %v608 = vpack.c.b16 %v508, %v504
    %v609 = vpack.c.b16 %v509, %v505
    %v610 = vpack.c.b16 %v510, %v506
    %v611 = vpack.c.b16 %v515, %v511
    %v612 = vpack.c.b16 %v516, %v512
    %v613 = vpack.c.b16 %v517, %v513
    %v614 = vpack.c.b16 %v518, %v514
    %v615 = vpack.c.b16 %v523, %v519
    %v616 = vpack.c.b16 %v524, %v520
    %v617 = vpack.c.b16 %v525, %v521
    %v618 = vpack.c.b16 %v526, %v522
    %v619 = vpack.c.b16 %v531, %v527
    %v620 = vpack.c.b16 %v532, %v528
    %v621 = vpack.c.b16 %v533, %v529
    %v622 = vpack.c.b16 %v534, %v530
    %v623 = vpack.c.b16 %v539, %v535
    %v624 = vpack.c.b16 %v540, %v536
    %v625 = vpack.c.b16 %v541, %v537
    %v626 = vpack.c.b16 %v542, %v538
    %v627 = vpack.c.b16 %v547, %v543
    %v628 = vpack.c.b16 %v548, %v544
    %v629 = vpack.c.b16 %v549, %v545
    %v630 = vpack.c.b16 %v550, %v546
    %v631 = vpack.c.b16 %v555, %v551
    %v632 = vpack.c.b16 %v556, %v552
    %v633 = vpack.c.b16 %v557, %v553
    %v634 = vpack.c.b16 %v558, %v554
    %v635 = vpack.c.b16 %v563, %v559
    %v636 = vpack.c.b16 %v564, %v560
    %v637 = vpack.c.b16 %v565, %v561
    %v638 = vpack.c.b16 %v566, %v562
    %v639 = vpack.c.b16 %v571, %v567
    %v640 = vpack.c.b16 %v572, %v568
    %v641 = vpack.c.b16 %v573, %v569
    %v642 = vpack.c.b16 %v574, %v570
    %v643 = vpack.c.b16 %v579, %v575
    %v644 = vpack.c.b16 %v580, %v576
    %v645 = vpack.c.b16 %v581, %v577
    %v646 = vpack.c.b16 %v582, %v578
    %711 = vmatprep.subr.bf16.mxu0 %v584
    %712 = vmatpush1.bf16.msra.mxu0 %v583
    %713 = vmatprep.subr.bf16.mxu0 %v588
    %714 = vmatpush1.bf16.msra.mxu0 %v587
    %715 = vmatprep.subr.bf16.mxu0 %v592
    %716 = vmatpush1.bf16.msra.mxu0 %v591
    %717 = vmatprep.subr.bf16.mxu0 %v596
    %718 = vmatpush1.bf16.msra.mxu0 %v595
    %719 = vmatprep.subr.bf16.mxu0 %v600
    %720 = vmatpush1.bf16.msra.mxu0 %v599
    %721 = vmatprep.subr.bf16.mxu0 %v604
    %722 = vmatpush1.bf16.msra.mxu0 %v603
    %723 = vmatprep.subr.bf16.mxu0 %v608
    %724 = vmatpush1.bf16.msra.mxu0 %v607
    %725 = vmatprep.subr.bf16.mxu0 %v612
    %726 = vmatpush1.bf16.msra.mxu0 %v611
    %727 = vmatprep.subr.bf16.mxu0 %v616
    %728 = vmatpush1.bf16.msra.mxu0 %v615
    %729 = vmatprep.subr.bf16.mxu0 %v620
    %730 = vmatpush1.bf16.msra.mxu0 %v619
    %731 = vmatprep.subr.bf16.mxu0 %v624
    %732 = vmatpush1.bf16.msra.mxu0 %v623
    %733 = vmatprep.subr.bf16.mxu0 %v628
    %734 = vmatpush1.bf16.msra.mxu0 %v627
    %735 = vmatprep.subr.bf16.mxu0 %v632
    %736 = vmatpush1.bf16.msra.mxu0 %v631
    %737 = vmatprep.subr.bf16.mxu0 %v636
    %738 = vmatpush1.bf16.msra.mxu0 %v635
    %739 = vmatprep.subr.bf16.mxu0 %v640
    %740 = vmatpush1.bf16.msra.mxu0 %v639
    %741 = vmatprep.subr.bf16.mxu0 %v644
    %742 = vmatpush1.bf16.msra.mxu0 %v643
    %743 = vmatprep.mubr.bf16.mxu0 %v304
    %744 = vmatmul.mubr.bf16.gmra.mrb[0].mxu0 %v303
    %v745 = vpop.f32.mrb[0].mxu0
    %v746 = vadd.f32 %v374, %v745
    %v747 = vpop.f32.mrb[0].mxu0
    %v748 = vadd.f32 %v378, %v747
    %v749 = vpop.f32.mrb[0].mxu0
    %v750 = vpop.f32.mrb[0].mxu0
    %751 = vdwg.mxu0
    %752 = vmatprep.subr.bf16.mxu0 %v586
    %753 = vmatpush1.bf16.msra.mxu0 %v585
    %754 = vmatprep.subr.bf16.mxu0 %v590
    %755 = vmatpush1.bf16.msra.mxu0 %v589
    %756 = vmatprep.subr.bf16.mxu0 %v594
    %757 = vmatpush1.bf16.msra.mxu0 %v593
    %758 = vmatprep.subr.bf16.mxu0 %v598
    %759 = vmatpush1.bf16.msra.mxu0 %v597
    %760 = vmatprep.subr.bf16.mxu0 %v602
    %761 = vmatpush1.bf16.msra.mxu0 %v601
    %762 = vmatprep.subr.bf16.mxu0 %v606
    %763 = vmatpush1.bf16.msra.mxu0 %v605
    %764 = vmatprep.subr.bf16.mxu0 %v610
    %765 = vmatpush1.bf16.msra.mxu0 %v609
    %766 = vmatprep.subr.bf16.mxu0 %v614
    %767 = vmatpush1.bf16.msra.mxu0 %v613
    %768 = vmatprep.subr.bf16.mxu0 %v618
    %769 = vmatpush1.bf16.msra.mxu0 %v617
    %770 = vmatprep.subr.bf16.mxu0 %v622
    %771 = vmatpush1.bf16.msra.mxu0 %v621
    %772 = vmatprep.subr.bf16.mxu0 %v626
    %773 = vmatpush1.bf16.msra.mxu0 %v625
    %774 = vmatprep.subr.bf16.mxu0 %v630
    %775 = vmatpush1.bf16.msra.mxu0 %v629
    %776 = vmatprep.subr.bf16.mxu0 %v634
    %777 = vmatpush1.bf16.msra.mxu0 %v633
    %778 = vmatprep.subr.bf16.mxu0 %v638
    %779 = vmatpush1.bf16.msra.mxu0 %v637
    %780 = vmatprep.subr.bf16.mxu0 %v642
    %781 = vmatpush1.bf16.msra.mxu0 %v641
    %782 = vmatprep.subr.bf16.mxu0 %v646
    %783 = vmatpush1.bf16.msra.mxu0 %v645
    %784 = vmatprep.mubr.bf16.mxu0 %v304
    %785 = vmatmul.mubr.bf16.gmra.mrb[0].mxu0 %v303
    %v786 = vpop.f32.mrb[0].mxu0
    %v787 = vadd.f32 %v382, %v786
    %v788 = vpop.f32.mrb[0].mxu0
    %v789 = vadd.f32 %v386, %v788
    %v790 = vpop.f32.mrb[0].mxu0
    %v791 = vpop.f32.mrb[0].mxu0
    %792 = vdwg.mxu0
    %v793 = vsub.f32 0.0, %v746
    %v794 = vsub.f32 0.0, %v748
    %v795 = vsub.f32 0.0, %v787
    %v796 = vsub.f32 0.0, %v789
    %v797 = vmul.f32 %v793, 1.442695
    %v798 = vpow.pop %v797
    %v799 = vmul.f32 %v794, 1.442695
    %v800 = vpow.pop %v799
    %v801 = vmul.f32 %v795, 1.442695
    %v802 = vpow.pop %v801
    %v803 = vmul.f32 %v796, 1.442695
    %v804 = vpow.pop %v803
    %v805 = vadd.f32 %v798, 1.0
    %v806 = vadd.f32 %v800, 1.0
    %v807 = vadd.f32 %v802, 1.0
    %v808 = vadd.f32 %v804, 1.0
    %v809 = vrcp.pop %v805
    %v810 = vrcp.pop %v806
    %v811 = vrcp.pop %v807
    %v812 = vrcp.pop %v808
    %813 = vst [vmem:[#allocation10] sm:$0xff] %v809
    %814 = vst [vmem:[#allocation10 + $0x8] sm:$0xff] %v810
    %815 = vst [vmem:[#allocation10 + $0x10] sm:$0xff] %v811
    %816 = vst [vmem:[#allocation10 + $0x18] sm:$0xff] %v812
    // Predicated region
    $region46: #{tpu_custom_call.1} parent=1 // pred_check
      _
    $region47: #{tpu_custom_call.1} parent=1 // pred_check_branch
      %818 = sbr.rel (0) target = $region49
    $region48: #{tpu_custom_call.1} parent=1 // pred_region
      %s820 = ssub.s32 512, 512
      %821 = vsyncadd [#allocation4], %s820
      %s823 = sshll.u32 [#allocation10], 4
      %s824 = int_to_ptr.vmem [resolvable:$true] %s823
      %826 = dma.vmem_to_hbm [thread:$0]  %s824, 512, %s7, [#allocation4]
    $region49: #{tpu_custom_call.1} parent=1 // pred_fallthru
      _
    // Predicated region
    $region50: #{tpu_custom_call.1} parent=1 // pred_check
      _
    $region51: #{tpu_custom_call.1} parent=1 // pred_check_branch
      %828 = sbr.rel (0) target = $region53
    $region52: #{tpu_custom_call.1} parent=1 // pred_region
      %829 = dma.done [#allocation4], 512
    $region53: #{tpu_custom_call.1} parent=1 // pred_fallthru
      _
    %830 = vsyncpa [#allocation3], 1
    %831 = vsyncpa [#allocation6], 1
    %832 = vsyncpa [#allocation9], 1
    %833 = vsyncpa [#allocation4], 1

</llo_original>
